<compile_context>
chip_gen: v7x
topology: tpu7x:2x2x1
jax: 0.10.0
libtpu: 0.0.40
codegen_flags: <defaults>
</compile_context>

<pallas_src>
import math

import jax
import jax.numpy as jnp
from jax.experimental import pallas as pl
from jax.experimental.pallas import tpu as pltpu

KH = KW = 3
TAPS = KH * KW
WINDOW = float(TAPS)  # window_size = kernel_h * kernel_w (matches PyTorch code)


def partial_conv_kernel(slab_ref, w_ref, out_ref, mask_out_ref):
    # slab_ref     : (F, Pt)     feature-major im2col tile; rows [0, 9*Cin) are the
    #                            9 taps of (x*mask), rows [9*Cin, F) are the 9 taps
    #                            of the per-pixel mask channel-sum.  Pixels on lanes.
    # w_ref        : (Cout+1, F) combined weights; rows [0, Cout) = conv weights,
    #                            row Cout = ones over the mask-sum rows (0 elsewhere).
    # out_ref      : (Cout, Pt)  ReLU(partial-conv output), lane-dense.
    # mask_out_ref : (1, Pt)     clamp(mask_conv output, 0, 1).
    cout = out_ref.shape[0]

    # Single MXU contraction produces both conv output (rows 0..Cout-1) and the
    # all-ones mask convolution (row Cout).
    res = jnp.dot(w_ref[...], slab_ref[...], preferred_element_type=jnp.float32)
    acc = res[:cout, :]                 # (Cout, Pt) input_conv(input * mask)
    macc = res[cout:cout + 1, :]        # (1, Pt)    mask_conv(mask)

    # Partial-conv renormalization (exactly as in the PyTorch forward) + ReLU.
    mask_ratio = WINDOW / (macc + 1e-8)
    out_mask = jnp.clip(macc, 0.0, 1.0)
    mask_ratio = mask_ratio * out_mask
    out = jnp.maximum(acc * mask_ratio, 0.0)

    out_ref[...] = out.astype(out_ref.dtype)
    mask_out_ref[...] = out_mask.astype(mask_out_ref.dtype)


def _im2col_feat_major(arr_nhwc):
    """Zero-pad by 1, extract 3x3 taps -> feature-major slab (KH*KW*C, N*H*W)."""
    N, H, W, C = arr_nhwc.shape
    xp = jnp.pad(arr_nhwc, ((0, 0), (1, 1), (1, 1), (0, 0)))
    taps = []
    for ky in range(KH):
        for kx in range(KW):
            taps.append(xp[:, ky:ky + H, kx:kx + W, :])     # (N, H, W, C)
    t = jnp.stack(taps, axis=3)                             # (N, H, W, 9, C)
    t = t.reshape(N * H * W, TAPS * C)                      # flat idx = tap*C + c
    return t.T                                              # (9*C, P)


def encoding_layer(x_nchw, mask_nchw, weight_oihw, *, block_p=512):
    """EncodingLayer.forward: (relu(partial_conv_out), clamped_mask_out), NCHW."""
    N, Cin, H, W = x_nchw.shape
    Cout = weight_oihw.shape[0]
    assert block_p % 128 == 0, "pixel tile must be lane-aligned (multiple of 128)"

    x = jnp.transpose(x_nchw, (0, 2, 3, 1)).astype(jnp.float32)     # NCHW -> NHWC
    m = jnp.transpose(mask_nchw, (0, 2, 3, 1)).astype(jnp.float32)

    # Pre-multiply once (removes 9 per-tap VPU multiplies and a full mask slab);
    # the mask conv only needs the per-pixel channel sum of the mask.
    xm = x * m                                                       # (N,H,W,Cin)
    msum = jnp.sum(m, axis=-1, keepdims=True)                        # (N,H,W,1)

    slab_x = _im2col_feat_major(xm)        # (9*Cin, P)
    slab_m = _im2col_feat_major(msum)      # (9,     P)
    slab = jnp.concatenate([slab_x, slab_m], axis=0)                 # (F, P)

    Fx = TAPS * Cin
    F = Fx + TAPS
    P = N * H * W
    n_tiles = pl.cdiv(P, block_p)
    P_pad = n_tiles * block_p
    if P_pad != P:
        slab = jnp.pad(slab, ((0, 0), (0, P_pad - P)))               # zero pixels: out=0

    # Combined weight: (Cout, Cin, KH, KW) -> (Cout, 9*Cin), plus an all-ones row
    # over the mask-sum features so one matmul yields the mask conv as row Cout.
    w_x = jnp.transpose(weight_oihw, (0, 2, 3, 1)).reshape(Cout, Fx).astype(jnp.float32)
    w_full = jnp.zeros((Cout + 1, F), jnp.float32)
    w_full = w_full.at[:Cout, :Fx].set(w_x)
    w_full = w_full.at[Cout, Fx:].set(1.0)

    cost = pl.CostEstimate(
        flops=2 * P_pad * F * (Cout + 1),
        transcendentals=0,
        bytes_accessed=4 * (F * P_pad + (Cout + 1) * F + (Cout + 2) * P_pad),
    )

    out2d, mask2d = pl.pallas_call(
        partial_conv_kernel,
        out_shape=(jax.ShapeDtypeStruct((Cout, P_pad), jnp.float32),
                   jax.ShapeDtypeStruct((1, P_pad), jnp.float32)),
        grid_spec=pltpu.PrefetchScalarGridSpec(
            num_scalar_prefetch=0,
            grid=(n_tiles,),
            in_specs=[
                pl.BlockSpec((F, block_p), lambda i: (0, i)),        # im2col tile
                pl.BlockSpec((Cout + 1, F), lambda i: (0, 0)),       # weights resident
            ],
            out_specs=(
                pl.BlockSpec((Cout, block_p), lambda i: (0, i)),
                pl.BlockSpec((1, block_p), lambda i: (0, i)),
            ),
        ),
        compiler_params=pltpu.CompilerParams(
            dimension_semantics=("parallel",),          # megacore sharding on v7x
            vmem_limit_bytes=32 * 1024 * 1024,
        ),
        cost_estimate=cost,
    )(slab, w_full)

    # Back to NCHW; the clamped mask is identical across output channels.
    out = out2d[:, :P].T.reshape(N, H, W, Cout)
    out = jnp.transpose(out, (0, 3, 1, 2))
    mask_row = mask2d[0, :P].reshape(N, H, W, 1)
    out_mask = jnp.transpose(jnp.broadcast_to(mask_row, (N, H, W, Cout)), (0, 3, 1, 2))
    return out, out_mask


def _reference(x, mask, weight):
    """Pure-JAX reference of the PyTorch forward (for correctness check)."""
    dn = ('NCHW', 'OIHW', 'NCHW')
    out = jax.lax.conv_general_dilated(x * mask, weight, (1, 1),
                                       ((1, 1), (1, 1)), dimension_numbers=dn)
    om = jax.lax.conv_general_dilated(mask, jnp.ones_like(weight), (1, 1),
                                      ((1, 1), (1, 1)), dimension_numbers=dn)
    ratio = WINDOW / (om + 1e-8)
    omc = jnp.clip(om, 0.0, 1.0)
    return jnp.maximum(out * ratio * omc, 0.0), omc


if __name__ == "__main__":
    key = jax.random.PRNGKey(0)
    kx, km, kw = jax.random.split(key, 3)

    N, Cin, Cout, H, W = 2, 4, 8, 16, 16   # in_filters=4, out_filters=8, 16x16 maps
    x = jax.random.normal(kx, (N, Cin, H, W), dtype=jnp.float32)
    mask = (jax.random.uniform(km, (N, Cin, H, W)) > 0.5).astype(jnp.float32)

    # Deterministic kaiming_normal_(a=0, mode='fan_in') init for input_conv weight.
    fan_in = Cin * KH * KW
    weight = jax.random.normal(kw, (Cout, Cin, KH, KW), dtype=jnp.float32) * math.sqrt(2.0 / fan_in)

    fn = jax.jit(encoding_layer, static_argnames=("block_p",))
    # block_p=256 -> P=512 pixels are processed in 2 pipelined grid steps.
    out, out_mask = fn(x, mask, weight, block_p=256)
    jax.block_until_ready((out, out_mask))

    ref_out, ref_mask = _reference(x, mask, weight)
    assert jnp.allclose(out, ref_out, atol=1e-4, rtol=1e-4), "output mismatch"
    assert jnp.allclose(out_mask, ref_mask, atol=1e-4, rtol=1e-4), "mask mismatch"

    print("KERNEL_OK")
</pallas_src>

<mosaic_0001>
module attributes {stable_mosaic.version = 11 : i64} {
  func.func @partial_conv_kernel(%arg0: i32, %arg1: memref<45x256xf32, #tpu.memory_space<vmem>>, %arg2: memref<9x45xf32, #tpu.memory_space<vmem>>, %arg3: memref<8x256xf32, #tpu.memory_space<vmem>>, %arg4: memref<1x256xf32, #tpu.memory_space<vmem>>) attributes {dimension_semantics = [#tpu.dimension_semantics<parallel>], iteration_bounds = array<i64: 2>, scalar_prefetch = 0 : i64, scratch_operands = 0 : i64, tpu.core_type = #tpu.core_type<tc>, window_params = [{transform_indices = @transform_0, window_bounds = array<i64: 45, 256>}, {pipeline_mode = #tpu.pipeline_mode<synchronous>, transform_indices = @transform_1, window_bounds = array<i64: 9, 45>}, {transform_indices = @transform_2, window_bounds = array<i64: 8, 256>}, {transform_indices = @transform_3, window_bounds = array<i64: 1, 256>}]} {
    %c0 = arith.constant 0 : index
    %c0_0 = arith.constant 0 : index
    %0 = vector.load %arg2[%c0, %c0_0] : memref<9x45xf32, #tpu.memory_space<vmem>>, vector<9x45xf32>
    %c0_1 = arith.constant 0 : index
    %c0_2 = arith.constant 0 : index
    %1 = vector.load %arg1[%c0_1, %c0_2] : memref<45x256xf32, #tpu.memory_space<vmem>>, vector<45x256xf32>
    %cst = arith.constant dense<0.000000e+00> : vector<9x256xf32>
    %2 = tpu.matmul %0, %1, %cst {dimension_numbers = #tpu.dot_dimension_numbers<[1], [0], [0], [1], [0, 0, 1, 1], [], []>} : vector<9x45xf32>, vector<45x256xf32>, vector<9x256xf32> -> vector<9x256xf32>
    %3 = vector.extract_strided_slice %2 {offsets = [0, 0], sizes = [8, 256], strides = [1, 1]} : vector<9x256xf32> to vector<8x256xf32>
    %4 = vector.extract_strided_slice %2 {offsets = [8, 0], sizes = [1, 256], strides = [1, 1]} : vector<9x256xf32> to vector<1x256xf32>
    %cst_3 = arith.constant 9.99999993E-9 : f32
    %5 = vector.broadcast %cst_3 : f32 to vector<1x256xf32>
    %6 = arith.addf %4, %5 : vector<1x256xf32>
    %cst_4 = arith.constant 9.000000e+00 : f32
    %7 = vector.broadcast %cst_4 : f32 to vector<1x256xf32>
    %8 = arith.divf %7, %6 : vector<1x256xf32>
    %cst_5 = arith.constant 0.000000e+00 : f32
    %cst_6 = arith.constant 1.000000e+00 : f32
    %9 = vector.broadcast %cst_5 : f32 to vector<1x256xf32>
    %10 = arith.maximumf %9, %4 : vector<1x256xf32>
    %11 = vector.broadcast %cst_6 : f32 to vector<1x256xf32>
    %12 = arith.minimumf %11, %10 : vector<1x256xf32>
    %13 = arith.mulf %8, %12 : vector<1x256xf32>
    %14 = vector.broadcast %13 : vector<1x256xf32> to vector<8x256xf32>
    %15 = arith.mulf %3, %14 : vector<8x256xf32>
    %cst_7 = arith.constant 0.000000e+00 : f32
    %16 = vector.broadcast %cst_7 : f32 to vector<8x256xf32>
    %17 = arith.maximumf %15, %16 : vector<8x256xf32>
    %c0_8 = arith.constant 0 : index
    %c0_9 = arith.constant 0 : index
    %18 = vector.load %arg3[%c0_8, %c0_9] : memref<8x256xf32, #tpu.memory_space<vmem>>, vector<8x256xf32>
    tpu.vector_store %arg3[%c0_8, %c0_9], %17 {strides = array<i32>} : memref<8x256xf32, #tpu.memory_space<vmem>>, vector<8x256xf32>,
    %c0_10 = arith.constant 0 : index
    %c0_11 = arith.constant 0 : index
    %19 = vector.load %arg4[%c0_10, %c0_11] : memref<1x256xf32, #tpu.memory_space<vmem>>, vector<1x256xf32>
    tpu.vector_store %arg4[%c0_10, %c0_11], %12 {strides = array<i32>} : memref<1x256xf32, #tpu.memory_space<vmem>>, vector<1x256xf32>,
    return
  }
  func.func @transform_0(%arg0: i32) -> (i32, i32) {
    %c0_i32 = arith.constant 0 : i32
    %c0_i32_0 = arith.constant 0 : i32
    return %c0_i32, %arg0 : i32, i32
  }
  func.func @transform_1(%arg0: i32) -> (i32, i32) {
    %c0_i32 = arith.constant 0 : i32
    %c0_i32_0 = arith.constant 0 : i32
    %c0_i32_1 = arith.constant 0 : i32
    return %c0_i32, %c0_i32_0 : i32, i32
  }
  func.func @transform_2(%arg0: i32) -> (i32, i32) {
    %c0_i32 = arith.constant 0 : i32
    %c0_i32_0 = arith.constant 0 : i32
    return %c0_i32, %arg0 : i32, i32
  }
  func.func @transform_3(%arg0: i32) -> (i32, i32) {
    %c0_i32 = arith.constant 0 : i32
    %c0_i32_0 = arith.constant 0 : i32
    return %c0_i32, %arg0 : i32, i32
  }
}

</mosaic_0001>

<llo_original>
// kernel: encoding_layer.1
$region0: #{encoding_layer.1}
  #allocation0 [shape = 'u32[]', space=smem, size = 0x4, offset = 0x4, fixed_abs, tag = 'smem constant byte address 0x4 - core index']
  #allocation1 [shape = 'u32[144,128]{1,0:T(1,128)}', space=vmem, size = 0x12000, scoped, tag = 'internal scratch']
  %s0 = inlined_call_operand.vmem [shape: f32[45,512], index: 0, kind: input, shape index: {}]
  %s1 = inlined_call_operand.vmem [shape: f32[9,45], index: 1, kind: input, shape index: {}]
  %s2 = inlined_call_operand.vmem [shape: f32[8,512], index: 2, kind: output, shape index: {0}]
  %s3 = inlined_call_operand.vmem [shape: f32[1,512], index: 3, kind: output, shape index: {1}]
  %4 = xla_tuple %s2, %s3
  %s5 = sld [smem:[#allocation0]]
  $region72: #{encoding_layer.1} parent=0
    _
  %s7 = ssub.s32 1, %s5
  %s8 = scalar_select 0, %s7, %s5
  $region1: #{encoding_layer.1} parent=0
    #allocation2 [shape = 'u8[98304]{0}', space=vmem, size = 0x18000, scoped, tag = 'input window, operand 0']
    loop: start=0, step=1, limit=4
    $region2: #{encoding_layer.1} parent=1 // loop_pre_header
      _
    $region3: #{encoding_layer.1} parent=1 // loop_header
      %s10 = sphi 0, %s14
      %p11 = scmp.ge.s32.totalorder %s10, 4
      %s20 = sphi 0, %s22
      %s23 = sphi 0, %s20
      %s24 = sphi 0, %s23
      %s40 = sphi 0, %s24
      %s44 = sphi 0, %s44
      %s46 = sphi 0, %s44
      %s47 = sphi 0, %s46
      %s61 = sphi 0, %s47
      %s67 = sphi 0, %s69
      %s70 = sphi 0, %s67
      %s71 = sphi 0, %s70
      %s87 = sphi 0, %s71
      %s93 = sphi 0, %s95
      %s96 = sphi 0, %s93
      %s97 = sphi 0, %s96
      %s113 = sphi 0, %s97
    $region4: #{encoding_layer.1} parent=1 // loop_header_branch
      %13 = sbr.rel (%p11) target = $region8
    $region5: #{encoding_layer.1} parent=1 // loop_body
      %s15 = ssub.s32 %s10, 1
      %s16 = ssub.s32 %s10, 2
      %s17 = sadd.s32 %s10, 1
      %s18 = ssub.s32 %s10, %s17
      %p19 = scmp.eq.s32.totalorder %s18, 0
      %s21 = sadd.s32 %s20, 1
      %s22 = scalar_select %p19, %s20, %s21
      %p25 = pneg %p19
      %p26 = scmp.eq.s32.totalorder %s10, 1
      %p27 = por %p25, %p26
      %p28 = scmp.ne.s32.totalorder %s20, %s23
      %p29 = scmp.eq.s32.totalorder %s10, 0
      %p30 = por %p28, %p29
      %p31 = scmp.ne.s32.totalorder %s20, %s23
      %p32 = scmp.eq.s32.totalorder %s15, 1
      %p33 = por %p31, %p32
      %p34 = scmp.ne.s32.totalorder %s23, %s24
      %p35 = scmp.eq.s32.totalorder %s15, 0
      %p36 = por %p34, %p35
      %p37 = scmp.ne.s32.totalorder %s23, %s24
      %p38 = scmp.eq.s32.totalorder %s16, 1
      %p39 = por %p37, %p38
      %p41 = scmp.ne.s32.totalorder %s24, %s40
      %p42 = scmp.eq.s32.totalorder %s16, 0
      %p43 = por %p41, %p42
      %s45 = sadd.s32 %s44, 1
      %p48 = scmp.eq.s32.totalorder %s10, 1
      %p49 = scmp.ne.s32.totalorder %s44, %s46
      %p50 = scmp.eq.s32.totalorder %s10, 0
      %p51 = por %p49, %p50
      %p52 = scmp.ne.s32.totalorder %s44, %s46
      %p53 = scmp.eq.s32.totalorder %s15, 1
      %p54 = por %p52, %p53
      %p55 = scmp.ne.s32.totalorder %s46, %s47
      %p56 = scmp.eq.s32.totalorder %s15, 0
      %p57 = por %p55, %p56
      %p58 = scmp.ne.s32.totalorder %s46, %s47
      %p59 = scmp.eq.s32.totalorder %s16, 1
      %p60 = por %p58, %p59
      %p62 = scmp.ne.s32.totalorder %s47, %s61
      %p63 = scmp.eq.s32.totalorder %s16, 0
      %p64 = por %p62, %p63
      %s65 = ssub.s32 %s10, %s17
      %p66 = scmp.eq.s32.totalorder %s65, 0
      %s68 = sadd.s32 %s67, 1
      %s69 = scalar_select %p66, %s67, %s68
      %p72 = pneg %p66
      %p73 = scmp.eq.s32.totalorder %s10, 1
      %p74 = por %p72, %p73
      %p75 = scmp.ne.s32.totalorder %s67, %s70
      %p76 = scmp.eq.s32.totalorder %s10, 0
      %p77 = por %p75, %p76
      %p78 = scmp.ne.s32.totalorder %s67, %s70
      %p79 = scmp.eq.s32.totalorder %s15, 1
      %p80 = por %p78, %p79
      %p81 = scmp.ne.s32.totalorder %s70, %s71
      %p82 = scmp.eq.s32.totalorder %s15, 0
      %p83 = por %p81, %p82
      %p84 = scmp.ne.s32.totalorder %s70, %s71
      %p85 = scmp.eq.s32.totalorder %s16, 1
      %p86 = por %p84, %p85
      %p88 = scmp.ne.s32.totalorder %s71, %s87
      %p89 = scmp.eq.s32.totalorder %s16, 0
      %p90 = por %p88, %p89
      %s91 = ssub.s32 %s10, %s17
      %p92 = scmp.eq.s32.totalorder %s91, 0
      %s94 = sadd.s32 %s93, 1
      %s95 = scalar_select %p92, %s93, %s94
      %p98 = pneg %p92
      %p99 = scmp.eq.s32.totalorder %s10, 1
      %p100 = por %p98, %p99
      %p101 = scmp.ne.s32.totalorder %s93, %s96
      %p102 = scmp.eq.s32.totalorder %s10, 0
      %p103 = por %p101, %p102
      %p104 = scmp.ne.s32.totalorder %s93, %s96
      %p105 = scmp.eq.s32.totalorder %s15, 1
      %p106 = por %p104, %p105
      %p107 = scmp.ne.s32.totalorder %s96, %s97
      %p108 = scmp.eq.s32.totalorder %s15, 0
      %p109 = por %p107, %p108
      %p110 = scmp.ne.s32.totalorder %s96, %s97
      %p111 = scmp.eq.s32.totalorder %s16, 1
      %p112 = por %p110, %p111
      %p114 = scmp.ne.s32.totalorder %s97, %s113
      %p115 = scmp.eq.s32.totalorder %s16, 0
      %p116 = por %p114, %p115
      %p117 = scmp.le.s32.totalorder 1, %s10
      %p118 = scmp.lt.s32.totalorder %s10, 3
      %p119 = pnand %p117, %p118
      %p120 = pneg %p119
      // Predicated region
      $region9: #{encoding_layer.1} parent=5 // pred_check
        _
      $region10: #{encoding_layer.1} parent=5 // pred_check_branch
        %122 = sbr.rel (%p119) target = $region12
      $region11: #{encoding_layer.1} parent=5 // pred_region
        %s123 = ssub.s32 %s10, 1
        // Predicated region
        $region13: #{encoding_layer.1} parent=11 // pred_check
          %p124 = pneg %p57
        $region14: #{encoding_layer.1} parent=11 // pred_check_branch
          %126 = sbr.rel (%p124) target = $region16
        $region15: #{encoding_layer.1} parent=11 // pred_region
          _
        $region16: #{encoding_layer.1} parent=11 // pred_fallthru
          _
      $region12: #{encoding_layer.1} parent=5 // pred_fallthru
        _
      %p127 = scmp.lt.s32.totalorder %s10, 2
      // Predicated region
      $region17: #{encoding_layer.1} parent=5 // pred_check
        %p128 = pneg %p127
      $region18: #{encoding_layer.1} parent=5 // pred_check_branch
        %130 = sbr.rel (%p128) target = $region20
      $region19: #{encoding_layer.1} parent=5 // pred_region
        // Predicated region
        $region21: #{encoding_layer.1} parent=19 // pred_check
          %p131 = pneg %p30
        $region22: #{encoding_layer.1} parent=19 // pred_check_branch
          %133 = sbr.rel (%p131) target = $region24
        $region23: #{encoding_layer.1} parent=19 // pred_region
          %s134 = sand.u32 %s20, 1
          %s135 = sand.u32 %s20, 1
          %s136 = smul.addr %s135, 96
          %s137 = scalar_lea.vmem [#allocation2], %s136
          %s138 = smul.u32 2, %s10
          %s139 = smul.addr %s138, 8
          %s140 = scalar_lea.vmem %s0, %s139
          // Predicated region
          $region25: #{encoding_layer.1} parent=23 // pred_check
            _
          $region26: #{encoding_layer.1} parent=23 // pred_check_branch
            %142 = sbr.rel (0) target = $region28
          $region27: #{encoding_layer.1} parent=23 // pred_region
            // Predicated region
            $region29: #{encoding_layer.1} parent=27 // pred_check
              _
            $region30: #{encoding_layer.1} parent=27 // pred_check_branch
              %144 = sbr.rel (0) target = $region32
            $region31: #{encoding_layer.1} parent=27 // pred_region
              loop: start=0, step=1, limit=1
              $region33: #{encoding_layer.1} parent=31 // loop_pre_header
                _
              $region34: #{encoding_layer.1} parent=31 // loop_header
                %s146 = sphi 0, %s150
                %p147 = scmp.ge.s32.totalorder %s146, 1
                %s151 = sphi %s140, %s140
                %s152 = sphi %s137, %s137
              $region35: #{encoding_layer.1} parent=31 // loop_header_branch
                %149 = sbr.rel (%p147) target = $region39
              $region36: #{encoding_layer.1} parent=31 // loop_body
                %v153 = vld [vmem:[%s151] sm:$0xff]
                %154 = vst [vmem:[%s152] sm:$0xff] %v153
                %v155 = vld [vmem:[%s151 + $0x8] sm:$0xff]
                %156 = vst [vmem:[%s152 + $0x8] sm:$0xff] %v155
                %v157 = vld [vmem:[%s151 + $0x20] sm:$0xff]
                %158 = vst [vmem:[%s152 + $0x10] sm:$0xff] %v157
                %v159 = vld [vmem:[%s151 + $0x28] sm:$0xff]
                %160 = vst [vmem:[%s152 + $0x18] sm:$0xff] %v159
                %v161 = vld [vmem:[%s151 + $0x40] sm:$0xff]
                %162 = vst [vmem:[%s152 + $0x20] sm:$0xff] %v161
                %v163 = vld [vmem:[%s151 + $0x48] sm:$0xff]
                %164 = vst [vmem:[%s152 + $0x28] sm:$0xff] %v163
                %v165 = vld [vmem:[%s151 + $0x60] sm:$0xff]
                %166 = vst [vmem:[%s152 + $0x30] sm:$0xff] %v165
                %v167 = vld [vmem:[%s151 + $0x68] sm:$0xff]
                %168 = vst [vmem:[%s152 + $0x38] sm:$0xff] %v167
                %v169 = vld [vmem:[%s151 + $0x80] sm:$0xff]
                %170 = vst [vmem:[%s152 + $0x40] sm:$0xff] %v169
                %v171 = vld [vmem:[%s151 + $0x88] sm:$0xff]
                %172 = vst [vmem:[%s152 + $0x48] sm:$0xff] %v171
                %v173 = vld [vmem:[%s151 + $0xa0] sm:$0xff]
                %174 = vst [vmem:[%s152 + $0x50] sm:$0xff] %v173
                %v175 = vld [vmem:[%s151 + $0xa8] sm:$0xff]
                %176 = vst [vmem:[%s152 + $0x58] sm:$0xff] %v175
              $region37: #{encoding_layer.1} parent=31 // loop_footer
                %s150 = sadd.s32 1, %s146
              $region38: #{encoding_layer.1} parent=31 // loop_footer_branch
                %145 = sbr.rel target = $region34
              $region39: #{encoding_layer.1} parent=31 // loop_exit
                _
            $region32: #{encoding_layer.1} parent=27 // pred_fallthru
              _
            // Predicated region
            $region40: #{encoding_layer.1} parent=27 // pred_check
              _
            $region41: #{encoding_layer.1} parent=27 // pred_check_branch
              %178 = sbr.rel target = $region43
            $region42: #{encoding_layer.1} parent=27 // pred_region
              _
            $region43: #{encoding_layer.1} parent=27 // pred_fallthru
              _
          $region28: #{encoding_layer.1} parent=23 // pred_fallthru
            _
          %179 = vnop
        $region24: #{encoding_layer.1} parent=19 // pred_fallthru
          _
      $region20: #{encoding_layer.1} parent=5 // pred_fallthru
        _
      %p180 = scmp.le.s32.totalorder 1, %s10
      %p181 = scmp.lt.s32.totalorder %s10, 3
      %p182 = pnand %p180, %p181
      %p183 = pneg %p182
      // Predicated region
      $region44: #{encoding_layer.1} parent=5 // pred_check
        _
      $region45: #{encoding_layer.1} parent=5 // pred_check_branch
        %185 = sbr.rel (%p182) target = $region47
      $region46: #{encoding_layer.1} parent=5 // pred_region
        %s186 = ssub.s32 %s10, 1
        %s187 = sand.u32 %s23, 1
        %s188 = sand.u32 %s23, 1
        %s189 = smul.addr %s188, 96
        %s190 = scalar_lea.vmem [#allocation2], %s189
        // Predicated region
        $region48: #{encoding_layer.1} parent=46 // pred_check
          %p191 = pneg %p36
        $region49: #{encoding_layer.1} parent=46 // pred_check_branch
          %193 = sbr.rel (%p191) target = $region51
        $region50: #{encoding_layer.1} parent=46 // pred_region
          _
        $region51: #{encoding_layer.1} parent=46 // pred_fallthru
          _
        %s194 = sand.u32 %s23, 1
        %s195 = sand.u32 %s23, 1
        %s196 = smul.addr %s195, 96
        %s197 = scalar_lea.vmem [#allocation2], %s196
        %p198 = pneg %p36
        %p199 = pneg %p33
        %p200 = pneg %p57
        %p201 = pneg %p54
        %p202 = pneg %p83
        %p203 = pneg %p80
        %s204 = smul.u32 2, %s15
        %p205 = scmp.lt.s32.totalorder %s204, 3
        %s206 = scalar_select %p205, %s204, 3
        %s207 = smul.addr %s206, 8
        %s208 = scalar_lea.vmem %s2, %s207
        %p209 = pneg %p109
        %p210 = pneg %p106
        %s211 = smul.u32 2, %s15
        %p212 = scmp.lt.s32.totalorder %s211, 3
        %s213 = scalar_select %p212, %s211, 3
        %s214 = scalar_lea.vmem %s3, %s213
        %s215 = smul.u32 2, %s15
        %s216 = smul.u32 2, %s15
        %p217 = scmp.lt.s32.totalorder %s216, 3
        %s218 = scalar_select %p217, %s216, 3
        %s219 = smul.addr %s218, 8
        %s220 = scalar_lea.vmem %s2, %s219
        %s221 = smul.u32 2, %s15
        %s222 = smul.u32 2, %s15
        %p223 = scmp.lt.s32.totalorder %s222, 3
        %s224 = scalar_select %p223, %s222, 3
        %s225 = scalar_lea.vmem %s3, %s224
        %s226 = smul.u32 2, %s15
        %v227 = vld [vmem:[%s1] sm:$0xff]
        %v228 = vld [vmem:[%s1 + $0x8] sm:$0x1]
        %v229 = vld [vmem:[%s190] sm:$0xff]
        %v230 = vld [vmem:[%s190 + $0x8] sm:$0xff]
        %v231 = vld [vmem:[%s190 + $0x10] sm:$0xff]
        %v232 = vld [vmem:[%s190 + $0x18] sm:$0xff]
        %v233 = vld [vmem:[%s190 + $0x20] sm:$0xff]
        %v234 = vld [vmem:[%s190 + $0x28] sm:$0xff]
        %v235 = vld [vmem:[%s190 + $0x30] sm:$0xff]
        %v236 = vld [vmem:[%s190 + $0x38] sm:$0xff]
        %v237 = vld [vmem:[%s190 + $0x40] sm:$0xff]
        %v238 = vld [vmem:[%s190 + $0x48] sm:$0xff]
        %v239 = vld [vmem:[%s190 + $0x50] sm:$0x1f]
        %v240 = vld [vmem:[%s190 + $0x58] sm:$0x1f]
        %vm241 = vcmask 367616
        %v243 = vsel %vm241, %v227, 0
        %v246 = vsel %vm241, %v228, 0
        %vm248 = vcmask 1044480
        %v250 = vsel %vm248, %v239, 0
        %v253 = vsel %vm248, %v240, 0
        %255 = vmatprep.subr.mxu0 %v230
        %256 = vmatpush1.msra.mxu0 %v229
        %257 = vmatprep.subr.mxu0 %v232
        %258 = vmatpush1.msra.mxu0 %v231
        %259 = vmatprep.subr.mxu0 %v234
        %260 = vmatpush1.msra.mxu0 %v233
        %261 = vmatprep.subr.mxu0 %v236
        %262 = vmatpush1.msra.mxu0 %v235
        %263 = vmatprep.subr.mxu0 %v238
        %264 = vmatpush1.msra.mxu0 %v237
        %265 = vmatprep.subr.mxu0 %v253
        %266 = vmatpush1.msra.mxu0 %v250
        %267 = vmatprep.subr.mxu0 0.0
        %268 = vmatpush1.msra.mxu0 0.0
        %269 = vmatprep.subr.mxu0 0.0
        %270 = vmatpush1.msra.mxu0 0.0
        %271 = vmatprep.subr.mxu0 0.0
        %272 = vmatpush1.msra.mxu0 0.0
        %273 = vmatprep.subr.mxu0 0.0
        %274 = vmatpush1.msra.mxu0 0.0
        %275 = vmatprep.subr.mxu0 0.0
        %276 = vmatpush1.msra.mxu0 0.0
        %277 = vmatprep.subr.mxu0 0.0
        %278 = vmatpush1.msra.mxu0 0.0
        %279 = vmatprep.subr.mxu0 0.0
        %280 = vmatpush1.msra.mxu0 0.0
        %281 = vmatprep.subr.mxu0 0.0
        %282 = vmatpush1.msra.mxu0 0.0
        %283 = vmatprep.subr.mxu0 0.0
        %284 = vmatpush1.msra.mxu0 0.0
        %285 = vmatprep.subr.mxu0 0.0
        %286 = vmatpush1.msra.mxu0 0.0
        %287 = vmatprep.subr.mxu0 0.0
        %288 = vmatpush1.msra.mxu0 0.0
        %289 = vmatprep.subr.mxu0 0.0
        %290 = vmatpush1.msra.mxu0 0.0
        %291 = vmatprep.subr.mxu0 0.0
        %292 = vmatpush1.msra.mxu0 0.0
        %293 = vmatprep.subr.mxu0 0.0
        %294 = vmatpush1.msra.mxu0 0.0
        %295 = vmatprep.subr.mxu0 0.0
        %296 = vmatpush1.msra.mxu0 0.0
        %297 = vmatprep.subr.mxu0 0.0
        %298 = vmatpush1.msra.mxu0 0.0
        %299 = vmatprep.subr.mxu0 0.0
        %300 = vmatpush1.msra.mxu0 0.0
        %301 = vmatprep.subr.mxu0 0.0
        %302 = vmatpush1.msra.mxu0 0.0
        %303 = vmatprep.subr.mxu0 0.0
        %304 = vmatpush1.msra.mxu0 0.0
        %305 = vmatprep.subr.mxu0 0.0
        %306 = vmatpush1.msra.mxu0 0.0
        %307 = vmatprep.subr.mxu0 0.0
        %308 = vmatpush1.msra.mxu0 0.0
        %309 = vmatprep.subr.mxu0 0.0
        %310 = vmatpush1.msra.mxu0 0.0
        %311 = vmatprep.subr.mxu0 0.0
        %312 = vmatpush1.msra.mxu0 0.0
        %313 = vmatprep.subr.mxu0 0.0
        %314 = vmatpush1.msra.mxu0 0.0
        %315 = vmatprep.subr.mxu0 0.0
        %316 = vmatpush1.msra.mxu0 0.0
        %317 = vmatprep.subr.mxu0 0.0
        %318 = vmatpush1.msra.mxu0 0.0
        %319 = vmatprep.mubr.f32.mxu0 0.0
        %320 = vmatmul.mubr.f32.gmra.mrb[0].mxu0 %v243
        %v321 = vpop.f32.mrb[0].mxu0
        %v322 = vadd.f32 0.0, %v321
        %v323 = vpop.f32.mrb[0].mxu0
        %v324 = vadd.f32 0.0, %v323
        %325 = vmatprep.mubr.f32.mxu0 0.0
        %326 = vmatmul.mubr.f32.gmra.mrb[0].mxu0 %v246
        %v327 = vpop.f32.mrb[0].mxu0
        %v328 = vadd.f32 0.0, %v327
        %v329 = vpop.f32.mrb[0].mxu0
        %v330 = vadd.f32 0.0, %v329
        %331 = vdwg.mxu0
        %v332 = vadd.f32 %v328, 1e-08
        %v333 = vadd.f32 %v330, 1e-08
        %v334 = vrcp.pop %v332
        %v335 = vmul.f32 9.0, %v334
        %v336 = vrcp.pop %v333
        %v337 = vmul.f32 9.0, %v336
        %v338 = vmax.f32 %v328, 0.0
        %v339 = vmax.f32 %v330, 0.0
        %v340 = vmin.f32 %v338, 1.0
        %v341 = vmin.f32 %v339, 1.0
        %v342 = vmul.f32 %v335, %v340
        %v343 = vmul.f32 %v337, %v341
        %v344 = vlaneseq
        %v345 = vshrl.u32 %v344, 7
        %v346 = vsub.s32 0, %v345
        %v347 = vrot.slane %v342, %v346
        %v348 = vlaneseq
        %v349 = vshrl.u32 %v348, 7
        %v350 = vsub.s32 0, %v349
        %v351 = vrot.slane %v343, %v350
        %v352 = vmul.f32 %v322, %v347
        %v353 = vmul.f32 %v324, %v351
        %v354 = vmax.f32 %v352, 0.0
        %v355 = vmax.f32 %v353, 0.0
        %356 = vst [vmem:[%s220] sm:$0xff] %v354
        %357 = vst [vmem:[%s220 + $0x8] sm:$0xff] %v355
        %v360 = vcombine.low %v340, %v341
        %v362 = vunpack.c.l.s4 1966171168
        %v363 = vunpack.c.0.s8 %v362
        %v364 = vlaneseq
        %v365 = vshrl.u32 %v364, 7
        %v366 = vsub.s32 %v363, %v365
        %v367 = vrot.slane %v360, %v366
        %v369 = vunpack.c.l.s4 1966171168
        %v370 = vunpack.c.0.s8 %v369
        %v371 = vlaneseq
        %v372 = vshrl.u32 %v371, 7
        %v373 = vsub.s32 %v370, %v372
        %v374 = vrot.slane %v367, %v373
        %v376 = vlaneseq
        %vm377 = vcmp.ge.s32.totalorder %v376, 0
        %vm378 = vcmp.lt.s32.totalorder %v376, 256
        %vm379 = vmand %vm377, %vm378
        %380 = vst.msk [vmem:[%s225] sm:$0x3] %vm379, %v374
        %s381 = smul.u32 2, %s15
        %p382 = scmp.lt.s32.totalorder %s381, 3
        %s383 = scalar_select %p382, %s381, 3
        %s384 = smul.addr %s383, 8
        %s385 = scalar_lea.vmem %s2, %s384
        %s386 = smul.u32 2, %s15
        %p387 = scmp.lt.s32.totalorder %s386, 3
        %s388 = scalar_select %p387, %s386, 3
        %s389 = scalar_lea.vmem %s3, %s388
        // Predicated region
        $region52: #{encoding_layer.1} parent=46 // pred_check
          %p390 = pneg %p80
        $region53: #{encoding_layer.1} parent=46 // pred_check_branch
          %392 = sbr.rel (%p390) target = $region55
        $region54: #{encoding_layer.1} parent=46 // pred_region
          %s393 = smul.u32 2, %s15
        $region55: #{encoding_layer.1} parent=46 // pred_fallthru
          _
        // Predicated region
        $region56: #{encoding_layer.1} parent=46 // pred_check
          %p394 = pneg %p106
        $region57: #{encoding_layer.1} parent=46 // pred_check_branch
          %396 = sbr.rel (%p394) target = $region59
        $region58: #{encoding_layer.1} parent=46 // pred_region
          %s397 = smul.u32 2, %s15
        $region59: #{encoding_layer.1} parent=46 // pred_fallthru
          _
      $region47: #{encoding_layer.1} parent=5 // pred_fallthru
        _
      %p398 = scmp.le.s32.totalorder 2, %s10
      // Predicated region
      $region60: #{encoding_layer.1} parent=5 // pred_check
        %p399 = pneg %p398
      $region61: #{encoding_layer.1} parent=5 // pred_check_branch
        %401 = sbr.rel (%p399) target = $region63
      $region62: #{encoding_layer.1} parent=5 // pred_region
        %s402 = ssub.s32 %s10, 2
        // Predicated region
        $region64: #{encoding_layer.1} parent=62 // pred_check
          %p403 = pneg %p86
        $region65: #{encoding_layer.1} parent=62 // pred_check_branch
          %405 = sbr.rel (%p403) target = $region67
        $region66: #{encoding_layer.1} parent=62 // pred_region
          %s406 = smul.u32 2, %s16
          %p407 = scmp.lt.s32.totalorder %s406, 3
          %s408 = scalar_select %p407, %s406, 3
          %s409 = smul.addr %s408, 8
          %s410 = scalar_lea.vmem %s2, %s409
        $region67: #{encoding_layer.1} parent=62 // pred_fallthru
          _
        // Predicated region
        $region68: #{encoding_layer.1} parent=62 // pred_check
          %p411 = pneg %p112
        $region69: #{encoding_layer.1} parent=62 // pred_check_branch
          %413 = sbr.rel (%p411) target = $region71
        $region70: #{encoding_layer.1} parent=62 // pred_region
          %s414 = smul.u32 2, %s16
          %p415 = scmp.lt.s32.totalorder %s414, 3
          %s416 = scalar_select %p415, %s414, 3
          %s417 = scalar_lea.vmem %s3, %s416
        $region71: #{encoding_layer.1} parent=62 // pred_fallthru
          _
      $region63: #{encoding_layer.1} parent=5 // pred_fallthru
        _
    $region6: #{encoding_layer.1} parent=1 // loop_footer
      %s14 = sadd.s32 1, %s10
    $region7: #{encoding_layer.1} parent=1 // loop_footer_branch
      %9 = sbr.rel target = $region3
    $region8: #{encoding_layer.1} parent=1 // loop_exit
      _

</llo_original>
